<compile_context>
chip_gen: v5e
topology: v5e:2x2
jax: 0.10.0
libtpu: 0.0.40
codegen_flags: <defaults>
</compile_context>

<pallas_src>
import functools

import jax
import jax.numpy as jnp
from jax.experimental import pallas as pl
from jax.experimental.pallas import tpu as pltpu


# ---------------------------------------------------------------------------
# Chip-aware configuration.
# ---------------------------------------------------------------------------
def _tpu_vmem_budgets():
    """(vmem_limit_bytes, fused_data_budget_bytes) scaled to this chip's VMEM."""
    cap = None
    try:
        cap = int(pltpu.get_tpu_info().vmem_capacity_bytes)
    except Exception:
        cap = None
    if not cap:
        try:
            kind = jax.devices()[0].device_kind.lower()
        except Exception:
            kind = ""
        # v7x has 64 MiB/TC; v5e/v6e have 128 MiB.
        cap = (64 if "7" in kind else 128) * 1024 * 1024
    vmem_limit = min((cap * 3) // 4, 100 * 1024 * 1024)   # ~96 MiB v5e/v6e, ~48 MiB v7x
    return vmem_limit, vmem_limit // 2


def _has_bf16_valu():
    """v6e/v7x have a bf16 VPU; v5e and older do not."""
    try:
        kind = jax.devices()[0].device_kind.lower()
    except Exception:
        return True
    return not any(t in kind for t in ("v2", "v3", "v4", "v5"))


# ---------------------------------------------------------------------------
# Single-pass fused kernel: pool + squeeze MLP + excite; x read from HBM once.
# ---------------------------------------------------------------------------
def _se_fused_kernel(x_ref, w1_ref, b1_ref, w2_ref, b2_ref, o_ref, *,
                     inv_hw, excite_dtype):
    # x_ref/o_ref: (Nb, C, HW); w1: (mid, C); b1: (1, mid); w2: (C, mid); b2: (C, 1)
    x = x_ref[...]

    # AdaptiveAvgPool2d(1): lane-axis sum (XLU) with f32 accumulation, then one
    # multiply by the hoisted 1/HW constant.
    pooled = jnp.sum(x.astype(jnp.float32), axis=-1) * inv_hw               # (Nb, C)

    # Squeeze MLP kept off the MXU (an MxKx1 matvec wastes the systolic array
    # and forces masked stores): VPU broadcast-multiply + XLU lane reductions
    # on tiny (Nb, mid, C) / (Nb, C, mid) tensors.
    h = jnp.sum(w1_ref[...][None] * pooled[:, None, :], axis=-1)            # (Nb, mid)
    h = jnp.maximum(h + b1_ref[...], 0.0)
    s = jnp.sum(w2_ref[...][None] * h[:, None, :], axis=-1, keepdims=True)  # (Nb, C, 1)
    s = jax.nn.sigmoid(s + b2_ref[...][None])

    # Excite: per-channel scale broadcast along the lane-dense spatial axis,
    # done in the input dtype on bf16-VALU chips (f32 only where required).
    o_ref[...] = (x.astype(excite_dtype) * s.astype(excite_dtype)).astype(o_ref.dtype)


# ---------------------------------------------------------------------------
# Fallback (slab does not fit VMEM): pool+MLP kernel emits the (N, C, 1) scale,
# then a streaming excite kernel; both tiled over (batch, HW).
# ---------------------------------------------------------------------------
def _se_pool_mlp_kernel(x_ref, w1_ref, b1_ref, w2_ref, b2_ref, s_ref, acc_ref, *,
                        hw, inv_hw, needs_mask):
    # x_ref: (Nb, C, THW); s_ref: (Nb, C, 1) scale output (resident across the
    # HW grid axis, written only on the final step); acc_ref: (Nb, C) f32.
    j = pl.program_id(1)
    last = pl.num_programs(1) - 1

    @pl.when(j == 0)
    def _():
        acc_ref[...] = jnp.zeros_like(acc_ref)

    xf = x_ref[...].astype(jnp.float32)
    if needs_mask:
        thw = x_ref.shape[-1]

        # Only the final (partial) HW tile needs lane masking.
        @pl.when(j == last)
        def _():
            lane = jax.lax.broadcasted_iota(jnp.int32, xf.shape, dimension=2)
            acc_ref[...] += jnp.sum(jnp.where(j * thw + lane < hw, xf, 0.0), axis=-1)

        @pl.when(j < last)
        def _():
            acc_ref[...] += jnp.sum(xf, axis=-1)
    else:
        acc_ref[...] += jnp.sum(xf, axis=-1)

    @pl.when(j == last)
    def _():
        pooled = acc_ref[...] * inv_hw                                      # (Nb, C)
        h = jnp.sum(w1_ref[...][None] * pooled[:, None, :], axis=-1)
        h = jnp.maximum(h + b1_ref[...], 0.0)
        s = jnp.sum(w2_ref[...][None] * h[:, None, :], axis=-1, keepdims=True)
        s_ref[...] = jax.nn.sigmoid(s + b2_ref[...][None]).astype(s_ref.dtype)


def _se_scale_kernel(x_ref, s_ref, o_ref):
    # x_ref/o_ref: (Nb, C, THW); s_ref: (Nb, C, 1) in the excite dtype.
    s = s_ref[...]
    o_ref[...] = (x_ref[...].astype(s.dtype) * s).astype(o_ref.dtype)


# ---------------------------------------------------------------------------
# Wrapper.
# ---------------------------------------------------------------------------
def se_module(x, w1, b1, w2, b2, *, data_budget_bytes=None):
    """x: (N, C, H, W); w1: (mid, C); b1: (mid, 1); w2: (C, mid); b2: (C, 1)."""
    N, C, H, W = x.shape
    mid = w1.shape[0]
    HW = H * W
    inv_hw = 1.0 / float(HW)
    itemsize = x.dtype.itemsize
    x3 = x.reshape(N, C, HW)

    vmem_limit, auto_budget = _tpu_vmem_budgets()
    data_budget = auto_budget if data_budget_bytes is None else data_budget_bytes

    # Excite-multiply dtype: input dtype on bf16-VALU chips / f32 inputs, else f32.
    excite_dtype = x.dtype if (x.dtype == jnp.float32 or _has_bf16_valu()) else jnp.float32
    excite_size = jnp.dtype(excite_dtype).itemsize

    b1_row = b1.reshape(1, mid)

    # Per-image VMEM for the fused path: double-buffered in + out blocks plus
    # the in-kernel f32 pooling cast and the pre-store excite product.
    per_image = C * HW * (2 * itemsize + 2 * itemsize + 4 + excite_size)
    nb_fit = int(data_budget // per_image)

    if nb_fit >= 1:
        # ---- single pass: read x once, write once, batch folded into block ----
        # Pick nb so the grid has >=2 steps when N >= 2 (two v7x TensorCores +
        # DMA/compute overlap) and ~4 steps while blocks stay multi-MiB.
        # Padded batch rows of a partial last block are computed on (including
        # sigmoid of garbage); this is safe only because every op here is
        # row-independent and Pallas drops out-of-extent writes.
        hbm_per_image = 2 * C * HW * itemsize            # one read + one write
        steps_cap = max(1, (N * hbm_per_image) // (2 * 1024 * 1024))
        desired_steps = max(min(4, N, steps_cap), min(2, N))
        nb = max(1, min(nb_fit, pl.cdiv(N, desired_steps)))

        out = pl.pallas_call(
            functools.partial(_se_fused_kernel, inv_hw=inv_hw, excite_dtype=excite_dtype),
            out_shape=jax.ShapeDtypeStruct((N, C, HW), x.dtype),
            grid=(pl.cdiv(N, nb),),
            in_specs=[
                pl.BlockSpec((nb, C, HW), lambda i: (i, 0, 0)),
                pl.BlockSpec((mid, C), lambda i: (0, 0)),
                pl.BlockSpec((1, mid), lambda i: (0, 0)),
                pl.BlockSpec((C, mid), lambda i: (0, 0)),
                pl.BlockSpec((C, 1), lambda i: (0, 0)),
            ],
            out_specs=pl.BlockSpec((nb, C, HW), lambda i: (i, 0, 0)),
            compiler_params=pltpu.CompilerParams(
                dimension_semantics=("parallel",),
                vmem_limit_bytes=vmem_limit),
        )(x3, w1, b1_row, w2, b2)
        return out.reshape(N, C, H, W)

    # ---- two passes: pool+MLP (emits scale) then excite, tiled over (N, HW) ----
    # Costs ~1.5x the HBM traffic of the fused path; only taken when even one
    # image's slab exceeds the VMEM budget (e.g. large maps on v7x's 64 MiB).
    nb = 1
    # Per-128-lane-column VMEM: double-buffered in + out tiles plus f32 temps.
    per_lane = nb * C * 128 * (4 * itemsize + 4 + excite_size)
    lanes_fit = max(1, int(data_budget // per_lane))
    thw = min(HW, 128 * lanes_fit)     # multiple of 128, or the full extent
    n_grid = pl.cdiv(N, nb)
    hw_grid = pl.cdiv(HW, thw)
    needs_mask = (HW % thw) != 0

    scale = pl.pallas_call(
        functools.partial(_se_pool_mlp_kernel, hw=HW, inv_hw=inv_hw, needs_mask=needs_mask),
        out_shape=jax.ShapeDtypeStruct((N, C, 1), excite_dtype),
        grid=(n_grid, hw_grid),
        in_specs=[pl.BlockSpec((nb, C, thw), lambda i, j: (i, 0, j)),
                  pl.BlockSpec((mid, C), lambda i, j: (0, 0)),
                  pl.BlockSpec((1, mid), lambda i, j: (0, 0)),
                  pl.BlockSpec((C, mid), lambda i, j: (0, 0)),
                  pl.BlockSpec((C, 1), lambda i, j: (0, 0))],
        out_specs=pl.BlockSpec((nb, C, 1), lambda i, j: (i, 0, 0)),
        scratch_shapes=[pltpu.VMEM((nb, C), jnp.float32)],
        compiler_params=pltpu.CompilerParams(
            dimension_semantics=("parallel", "arbitrary"),
            vmem_limit_bytes=vmem_limit),
    )(x3, w1, b1_row, w2, b2)

    out = pl.pallas_call(
        _se_scale_kernel,
        out_shape=jax.ShapeDtypeStruct((N, C, HW), x.dtype),
        grid=(n_grid, hw_grid),
        in_specs=[pl.BlockSpec((nb, C, thw), lambda i, j: (i, 0, j)),
                  pl.BlockSpec((nb, C, 1), lambda i, j: (i, 0, 0))],
        out_specs=pl.BlockSpec((nb, C, thw), lambda i, j: (i, 0, j)),
        compiler_params=pltpu.CompilerParams(
            dimension_semantics=("parallel", "parallel"),
            vmem_limit_bytes=vmem_limit),
    )(x3, scale)
    return out.reshape(N, C, H, W)


def se_reference(x, w1, b1, w2, b2):
    pooled = jnp.mean(x, axis=(2, 3))                          # (N, C)
    h = jnp.maximum(pooled @ w1.T + b1[:, 0], 0.0)             # (N, mid)
    s = jax.nn.sigmoid(h @ w2.T + b2[:, 0])                    # (N, C)
    return x * s[:, :, None, None]


if __name__ == "__main__":
    # DBlock(in_channels=16, out_channels=16, ...) builds SEModule(16, 16), i.e.
    # the SE stage sees a 16-channel feature map with mid_channel = 16 // 4 = 4.
    in_channel, out_channel = 16, 16
    mid_channel = out_channel // 4
    N, H, W = 2, 16, 16

    key = jax.random.PRNGKey(0)
    kx, k1, k2, k3, k4 = jax.random.split(key, 5)

    x  = jax.random.normal(kx, (N, in_channel, H, W), dtype=jnp.float32)
    # Conv2d 1x1 weights (kernel dims squeezed): (out, in)
    w1 = jax.random.normal(k1, (mid_channel, in_channel), dtype=jnp.float32) * 0.1
    b1 = jax.random.normal(k2, (mid_channel, 1), dtype=jnp.float32) * 0.1
    w2 = jax.random.normal(k3, (in_channel, mid_channel), dtype=jnp.float32) * 0.1
    b2 = jax.random.normal(k4, (in_channel, 1), dtype=jnp.float32) * 0.1

    ref = se_reference(x, w1, b1, w2, b2)

    # Fast path: fused single-HBM-read kernel (>=2 grid steps since N >= 2).
    out = se_module(x, w1, b1, w2, b2)
    jax.block_until_ready(out)
    assert out.shape == x.shape and out.dtype == x.dtype
    assert jnp.allclose(out, ref, atol=1e-5, rtol=1e-5)

    # Fallback path: force the pool+MLP / scale two-kernel structure used when
    # a single-image slab exceeds the VMEM budget (tiled over batch and HW).
    out2 = se_module(x, w1, b1, w2, b2, data_budget_bytes=1)
    jax.block_until_ready(out2)
    assert jnp.allclose(out2, ref, atol=1e-5, rtol=1e-5)

    # Non-multiple-of-128 spatial extent: exercises the partial-last-tile lane
    # mask in the fallback pool kernel.
    Hm, Wm = 10, 13
    xm = jax.random.normal(kx, (N, in_channel, Hm, Wm), dtype=jnp.float32)
    refm = se_reference(xm, w1, b1, w2, b2)
    outm = se_module(xm, w1, b1, w2, b2, data_budget_bytes=1)
    jax.block_until_ready(outm)
    assert jnp.allclose(outm, refm, atol=1e-5, rtol=1e-5)

    print("KERNEL_OK")
</pallas_src>

<mosaic_0001>
module attributes {stable_mosaic.version = 11 : i64} {
  func.func @_se_fused_kernel(%arg0: i32, %arg1: memref<1x16x256xf32, #tpu.memory_space<vmem>>, %arg2: memref<4x16xf32, #tpu.memory_space<vmem>>, %arg3: memref<1x4xf32, #tpu.memory_space<vmem>>, %arg4: memref<16x4xf32, #tpu.memory_space<vmem>>, %arg5: memref<16x1xf32, #tpu.memory_space<vmem>>, %arg6: memref<1x16x256xf32, #tpu.memory_space<vmem>>) attributes {dimension_semantics = [#tpu.dimension_semantics<parallel>], iteration_bounds = array<i64: 2>, scalar_prefetch = 0 : i64, scratch_operands = 0 : i64, tpu.core_type = #tpu.core_type<tc>, window_params = [{transform_indices = @transform_0, window_bounds = array<i64: 1, 16, 256>}, {pipeline_mode = #tpu.pipeline_mode<synchronous>, transform_indices = @transform_1, window_bounds = array<i64: 4, 16>}, {pipeline_mode = #tpu.pipeline_mode<synchronous>, transform_indices = @transform_2, window_bounds = array<i64: 1, 4>}, {pipeline_mode = #tpu.pipeline_mode<synchronous>, transform_indices = @transform_3, window_bounds = array<i64: 16, 4>}, {pipeline_mode = #tpu.pipeline_mode<synchronous>, transform_indices = @transform_4, window_bounds = array<i64: 16, 1>}, {transform_indices = @transform_5, window_bounds = array<i64: 1, 16, 256>}]} {
    %c0 = arith.constant 0 : index
    %c0_0 = arith.constant 0 : index
    %c0_1 = arith.constant 0 : index
    %0 = vector.load %arg1[%c0, %c0_0, %c0_1] : memref<1x16x256xf32, #tpu.memory_space<vmem>>, vector<1x16x256xf32>
    %cst = arith.constant dense<0.000000e+00> : vector<1x16xf32>
    %1 = vector.multi_reduction <add>, %0, %cst [2] : vector<1x16x256xf32> to vector<1x16xf32>
    %cst_2 = arith.constant 3.906250e-03 : f32
    %2 = vector.broadcast %cst_2 : f32 to vector<1x16xf32>
    %3 = arith.mulf %1, %2 : vector<1x16xf32>
    %c0_3 = arith.constant 0 : index
    %c0_4 = arith.constant 0 : index
    %4 = vector.load %arg2[%c0_3, %c0_4] : memref<4x16xf32, #tpu.memory_space<vmem>>, vector<4x16xf32>
    %5 = vector.shape_cast %4 : vector<4x16xf32> to vector<1x4x16xf32>
    %6 = vector.shape_cast %3 : vector<1x16xf32> to vector<1x1x16xf32>
    %7 = vector.broadcast %6 : vector<1x1x16xf32> to vector<1x4x16xf32>
    %8 = arith.mulf %5, %7 : vector<1x4x16xf32>
    %cst_5 = arith.constant dense<0.000000e+00> : vector<1x4xf32>
    %9 = vector.multi_reduction <add>, %8, %cst_5 [2] : vector<1x4x16xf32> to vector<1x4xf32>
    %c0_6 = arith.constant 0 : index
    %c0_7 = arith.constant 0 : index
    %10 = vector.load %arg3[%c0_6, %c0_7] : memref<1x4xf32, #tpu.memory_space<vmem>>, vector<1x4xf32>
    %11 = arith.addf %9, %10 : vector<1x4xf32>
    %cst_8 = arith.constant 0.000000e+00 : f32
    %12 = vector.broadcast %cst_8 : f32 to vector<1x4xf32>
    %13 = arith.maximumf %11, %12 : vector<1x4xf32>
    %c0_9 = arith.constant 0 : index
    %c0_10 = arith.constant 0 : index
    %14 = vector.load %arg4[%c0_9, %c0_10] : memref<16x4xf32, #tpu.memory_space<vmem>>, vector<16x4xf32>
    %15 = vector.shape_cast %14 : vector<16x4xf32> to vector<1x16x4xf32>
    %16 = vector.shape_cast %13 : vector<1x4xf32> to vector<1x1x4xf32>
    %17 = vector.broadcast %16 : vector<1x1x4xf32> to vector<1x16x4xf32>
    %18 = arith.mulf %15, %17 : vector<1x16x4xf32>
    %cst_11 = arith.constant dense<0.000000e+00> : vector<1x16xf32>
    %19 = vector.multi_reduction <add>, %18, %cst_11 [2] : vector<1x16x4xf32> to vector<1x16xf32>
    %20 = vector.shape_cast %19 : vector<1x16xf32> to vector<1x16x1xf32>
    %c0_12 = arith.constant 0 : index
    %c0_13 = arith.constant 0 : index
    %21 = vector.load %arg5[%c0_12, %c0_13] : memref<16x1xf32, #tpu.memory_space<vmem>>, vector<16x1xf32>
    %22 = vector.shape_cast %21 : vector<16x1xf32> to vector<1x16x1xf32>
    %23 = arith.addf %20, %22 : vector<1x16x1xf32>
    %24 = arith.negf %23 : vector<1x16x1xf32>
    %25 = math.exp %24 : vector<1x16x1xf32>
    %cst_14 = arith.constant 1.000000e+00 : f32
    %26 = vector.broadcast %cst_14 : f32 to vector<1x16x1xf32>
    %27 = arith.addf %26, %25 : vector<1x16x1xf32>
    %28 = arith.divf %26, %27 : vector<1x16x1xf32>
    %29 = vector.broadcast %28 : vector<1x16x1xf32> to vector<1x16x256xf32>
    %30 = arith.mulf %0, %29 : vector<1x16x256xf32>
    %c0_15 = arith.constant 0 : index
    %c0_16 = arith.constant 0 : index
    %c0_17 = arith.constant 0 : index
    %31 = vector.load %arg6[%c0_15, %c0_16, %c0_17] : memref<1x16x256xf32, #tpu.memory_space<vmem>>, vector<1x16x256xf32>
    tpu.vector_store %arg6[%c0_15, %c0_16, %c0_17], %30 {strides = array<i32>} : memref<1x16x256xf32, #tpu.memory_space<vmem>>, vector<1x16x256xf32>,
    return
  }
  func.func @transform_0(%arg0: i32) -> (i32, i32, i32) {
    %c0_i32 = arith.constant 0 : i32
    %c0_i32_0 = arith.constant 0 : i32
    %c0_i32_1 = arith.constant 0 : i32
    return %arg0, %c0_i32, %c0_i32_0 : i32, i32, i32
  }
  func.func @transform_1(%arg0: i32) -> (i32, i32) {
    %c0_i32 = arith.constant 0 : i32
    %c0_i32_0 = arith.constant 0 : i32
    %c0_i32_1 = arith.constant 0 : i32
    return %c0_i32, %c0_i32_0 : i32, i32
  }
  func.func @transform_2(%arg0: i32) -> (i32, i32) {
    %c0_i32 = arith.constant 0 : i32
    %c0_i32_0 = arith.constant 0 : i32
    %c0_i32_1 = arith.constant 0 : i32
    return %c0_i32, %c0_i32_0 : i32, i32
  }
  func.func @transform_3(%arg0: i32) -> (i32, i32) {
    %c0_i32 = arith.constant 0 : i32
    %c0_i32_0 = arith.constant 0 : i32
    %c0_i32_1 = arith.constant 0 : i32
    return %c0_i32, %c0_i32_0 : i32, i32
  }
  func.func @transform_4(%arg0: i32) -> (i32, i32) {
    %c0_i32 = arith.constant 0 : i32
    %c0_i32_0 = arith.constant 0 : i32
    %c0_i32_1 = arith.constant 0 : i32
    return %c0_i32, %c0_i32_0 : i32, i32
  }
  func.func @transform_5(%arg0: i32) -> (i32, i32, i32) {
    %c0_i32 = arith.constant 0 : i32
    %c0_i32_0 = arith.constant 0 : i32
    %c0_i32_1 = arith.constant 0 : i32
    return %arg0, %c0_i32, %c0_i32_0 : i32, i32, i32
  }
}

</mosaic_0001>

<llo_original>
// kernel: tpu_custom_call.1
$region0: #{tpu_custom_call.1}
  #allocation0 [shape = 'u32[]', space=smem, size = 0x4, offset = 0x4, fixed_abs, tag = 'smem constant byte address 0x4 - core index']
  #allocation1 [shape = 'u32[72,128]{1,0:T(1,128)}', space=vmem, size = 0x9000, scoped, tag = 'internal scratch']
  %s0 = inlined_call_operand.hbm [shape: f32[2,16,256], index: 0, kind: input, shape index: {}]
  %s1 = inlined_call_operand.vmem [shape: f32[4,16], index: 1, kind: input, shape index: {}]
  %s2 = inlined_call_operand.vmem [shape: f32[1,4], index: 2, kind: input, shape index: {}]
  %s3 = inlined_call_operand.vmem [shape: f32[16,4], index: 3, kind: input, shape index: {}]
  %s4 = inlined_call_operand.vmem [shape: f32[16,1], index: 4, kind: input, shape index: {}]
  %s5 = inlined_call_operand.hbm [shape: f32[2,16,256], index: 5, kind: output, shape index: {}]
  %s6 = sld [smem:[#allocation0]]
  $region57: #{tpu_custom_call.1} parent=0
    _
  %s8 = ssub.s32 1, %s6
  %s9 = scalar_select 0, %s8, %s6
  $region1: #{tpu_custom_call.1} parent=0
    #allocation2 [shape = 'u8[32768]{0}', space=vmem, size = 0x8000, scoped, tag = 'input window, operand 0']
    #allocation3 [shape = 's32[2]{0}', space=sflag, size = 0x8, scoped, tag = 'scoped memory for tpu_custom_call.1']
    #allocation4 [shape = 's32[2]{0}', space=sflag, size = 0x8, scoped, tag = 'scoped memory for tpu_custom_call.1']
    #allocation5 [shape = 'u8[32768]{0}', space=vmem, size = 0x8000, scoped, tag = 'output window, operand 0']
    %10 = vsyncpa [#allocation3], 0
    %s11 = scalar_lea.sflag [#allocation3], 1
    %12 = vsyncpa %s11, 0
    %13 = vsyncpa [#allocation4], 0
    %s14 = scalar_lea.sflag [#allocation4], 1
    %15 = vsyncpa %s14, 0
    loop: start=0, step=1, limit=4
    $region2: #{tpu_custom_call.1} parent=1 // loop_pre_header
      _
    $region3: #{tpu_custom_call.1} parent=1 // loop_header
      %s17 = sphi 0, %s21
      %p18 = scmp.ge.s32.totalorder %s17, 4
      %s27 = sphi 0, %s29
      %s30 = sphi 0, %s27
      %s31 = sphi 0, %s30
      %s47 = sphi 0, %s31
      %s51 = sphi 0, %s51
      %s53 = sphi 0, %s51
      %s54 = sphi 0, %s53
      %s68 = sphi 0, %s54
      %s72 = sphi 0, %s72
      %s74 = sphi 0, %s72
      %s75 = sphi 0, %s74
      %s89 = sphi 0, %s75
      %s93 = sphi 0, %s93
      %s95 = sphi 0, %s93
      %s96 = sphi 0, %s95
      %s110 = sphi 0, %s96
      %s114 = sphi 0, %s114
      %s116 = sphi 0, %s114
      %s117 = sphi 0, %s116
      %s131 = sphi 0, %s117
      %s137 = sphi 0, %s139
      %s140 = sphi 0, %s137
      %s141 = sphi 0, %s140
      %s157 = sphi 0, %s141
    $region4: #{tpu_custom_call.1} parent=1 // loop_header_branch
      %20 = sbr.rel (%p18) target = $region8
    $region5: #{tpu_custom_call.1} parent=1 // loop_body
      %s22 = ssub.s32 %s17, 1
      %s23 = ssub.s32 %s17, 2
      %s24 = sadd.s32 %s17, 1
      %s25 = ssub.s32 %s17, %s24
      %p26 = scmp.eq.s32.totalorder %s25, 0
      %s28 = sadd.s32 %s27, 1
      %s29 = scalar_select %p26, %s27, %s28
      %p32 = pneg %p26
      %p33 = scmp.eq.s32.totalorder %s17, 1
      %p34 = por %p32, %p33
      %p35 = scmp.ne.s32.totalorder %s27, %s30
      %p36 = scmp.eq.s32.totalorder %s17, 0
      %p37 = por %p35, %p36
      %p38 = scmp.ne.s32.totalorder %s27, %s30
      %p39 = scmp.eq.s32.totalorder %s22, 1
      %p40 = por %p38, %p39
      %p41 = scmp.ne.s32.totalorder %s30, %s31
      %p42 = scmp.eq.s32.totalorder %s22, 0
      %p43 = por %p41, %p42
      %p44 = scmp.ne.s32.totalorder %s30, %s31
      %p45 = scmp.eq.s32.totalorder %s23, 1
      %p46 = por %p44, %p45
      %p48 = scmp.ne.s32.totalorder %s31, %s47
      %p49 = scmp.eq.s32.totalorder %s23, 0
      %p50 = por %p48, %p49
      %s52 = sadd.s32 %s51, 1
      %p55 = scmp.eq.s32.totalorder %s17, 1
      %p56 = scmp.ne.s32.totalorder %s51, %s53
      %p57 = scmp.eq.s32.totalorder %s17, 0
      %p58 = por %p56, %p57
      %p59 = scmp.ne.s32.totalorder %s51, %s53
      %p60 = scmp.eq.s32.totalorder %s22, 1
      %p61 = por %p59, %p60
      %p62 = scmp.ne.s32.totalorder %s53, %s54
      %p63 = scmp.eq.s32.totalorder %s22, 0
      %p64 = por %p62, %p63
      %p65 = scmp.ne.s32.totalorder %s53, %s54
      %p66 = scmp.eq.s32.totalorder %s23, 1
      %p67 = por %p65, %p66
      %p69 = scmp.ne.s32.totalorder %s54, %s68
      %p70 = scmp.eq.s32.totalorder %s23, 0
      %p71 = por %p69, %p70
      %s73 = sadd.s32 %s72, 1
      %p76 = scmp.eq.s32.totalorder %s17, 1
      %p77 = scmp.ne.s32.totalorder %s72, %s74
      %p78 = scmp.eq.s32.totalorder %s17, 0
      %p79 = por %p77, %p78
      %p80 = scmp.ne.s32.totalorder %s72, %s74
      %p81 = scmp.eq.s32.totalorder %s22, 1
      %p82 = por %p80, %p81
      %p83 = scmp.ne.s32.totalorder %s74, %s75
      %p84 = scmp.eq.s32.totalorder %s22, 0
      %p85 = por %p83, %p84
      %p86 = scmp.ne.s32.totalorder %s74, %s75
      %p87 = scmp.eq.s32.totalorder %s23, 1
      %p88 = por %p86, %p87
      %p90 = scmp.ne.s32.totalorder %s75, %s89
      %p91 = scmp.eq.s32.totalorder %s23, 0
      %p92 = por %p90, %p91
      %s94 = sadd.s32 %s93, 1
      %p97 = scmp.eq.s32.totalorder %s17, 1
      %p98 = scmp.ne.s32.totalorder %s93, %s95
      %p99 = scmp.eq.s32.totalorder %s17, 0
      %p100 = por %p98, %p99
      %p101 = scmp.ne.s32.totalorder %s93, %s95
      %p102 = scmp.eq.s32.totalorder %s22, 1
      %p103 = por %p101, %p102
      %p104 = scmp.ne.s32.totalorder %s95, %s96
      %p105 = scmp.eq.s32.totalorder %s22, 0
      %p106 = por %p104, %p105
      %p107 = scmp.ne.s32.totalorder %s95, %s96
      %p108 = scmp.eq.s32.totalorder %s23, 1
      %p109 = por %p107, %p108
      %p111 = scmp.ne.s32.totalorder %s96, %s110
      %p112 = scmp.eq.s32.totalorder %s23, 0
      %p113 = por %p111, %p112
      %s115 = sadd.s32 %s114, 1
      %p118 = scmp.eq.s32.totalorder %s17, 1
      %p119 = scmp.ne.s32.totalorder %s114, %s116
      %p120 = scmp.eq.s32.totalorder %s17, 0
      %p121 = por %p119, %p120
      %p122 = scmp.ne.s32.totalorder %s114, %s116
      %p123 = scmp.eq.s32.totalorder %s22, 1
      %p124 = por %p122, %p123
      %p125 = scmp.ne.s32.totalorder %s116, %s117
      %p126 = scmp.eq.s32.totalorder %s22, 0
      %p127 = por %p125, %p126
      %p128 = scmp.ne.s32.totalorder %s116, %s117
      %p129 = scmp.eq.s32.totalorder %s23, 1
      %p130 = por %p128, %p129
      %p132 = scmp.ne.s32.totalorder %s117, %s131
      %p133 = scmp.eq.s32.totalorder %s23, 0
      %p134 = por %p132, %p133
      %s135 = ssub.s32 %s17, %s24
      %p136 = scmp.eq.s32.totalorder %s135, 0
      %s138 = sadd.s32 %s137, 1
      %s139 = scalar_select %p136, %s137, %s138
      %p142 = pneg %p136
      %p143 = scmp.eq.s32.totalorder %s17, 1
      %p144 = por %p142, %p143
      %p145 = scmp.ne.s32.totalorder %s137, %s140
      %p146 = scmp.eq.s32.totalorder %s17, 0
      %p147 = por %p145, %p146
      %p148 = scmp.ne.s32.totalorder %s137, %s140
      %p149 = scmp.eq.s32.totalorder %s22, 1
      %p150 = por %p148, %p149
      %p151 = scmp.ne.s32.totalorder %s140, %s141
      %p152 = scmp.eq.s32.totalorder %s22, 0
      %p153 = por %p151, %p152
      %p154 = scmp.ne.s32.totalorder %s140, %s141
      %p155 = scmp.eq.s32.totalorder %s23, 1
      %p156 = por %p154, %p155
      %p158 = scmp.ne.s32.totalorder %s141, %s157
      %p159 = scmp.eq.s32.totalorder %s23, 0
      %p160 = por %p158, %p159
      %p161 = scmp.le.s32.totalorder 1, %s17
      %p162 = scmp.lt.s32.totalorder %s17, 3
      %p163 = pnand %p161, %p162
      %p164 = pneg %p163
      // Predicated region
      $region9: #{tpu_custom_call.1} parent=5 // pred_check
        _
      $region10: #{tpu_custom_call.1} parent=5 // pred_check_branch
        %166 = sbr.rel (%p163) target = $region12
      $region11: #{tpu_custom_call.1} parent=5 // pred_region
        %s167 = ssub.s32 %s17, 1
        // Predicated region
        $region13: #{tpu_custom_call.1} parent=11 // pred_check
          %p168 = pneg %p64
        $region14: #{tpu_custom_call.1} parent=11 // pred_check_branch
          %170 = sbr.rel (%p168) target = $region16
        $region15: #{tpu_custom_call.1} parent=11 // pred_region
          _
        $region16: #{tpu_custom_call.1} parent=11 // pred_fallthru
          _
        // Predicated region
        $region17: #{tpu_custom_call.1} parent=11 // pred_check
          %p171 = pneg %p85
        $region18: #{tpu_custom_call.1} parent=11 // pred_check_branch
          %173 = sbr.rel (%p171) target = $region20
        $region19: #{tpu_custom_call.1} parent=11 // pred_region
          _
        $region20: #{tpu_custom_call.1} parent=11 // pred_fallthru
          _
        // Predicated region
        $region21: #{tpu_custom_call.1} parent=11 // pred_check
          %p174 = pneg %p106
        $region22: #{tpu_custom_call.1} parent=11 // pred_check_branch
          %176 = sbr.rel (%p174) target = $region24
        $region23: #{tpu_custom_call.1} parent=11 // pred_region
          _
        $region24: #{tpu_custom_call.1} parent=11 // pred_fallthru
          _
        // Predicated region
        $region25: #{tpu_custom_call.1} parent=11 // pred_check
          %p177 = pneg %p127
        $region26: #{tpu_custom_call.1} parent=11 // pred_check_branch
          %179 = sbr.rel (%p177) target = $region28
        $region27: #{tpu_custom_call.1} parent=11 // pred_region
          _
        $region28: #{tpu_custom_call.1} parent=11 // pred_fallthru
          _
      $region12: #{tpu_custom_call.1} parent=5 // pred_fallthru
        _
      %p180 = scmp.lt.s32.totalorder %s17, 2
      // Predicated region
      $region29: #{tpu_custom_call.1} parent=5 // pred_check
        %p181 = pneg %p180
      $region30: #{tpu_custom_call.1} parent=5 // pred_check_branch
        %183 = sbr.rel (%p181) target = $region32
      $region31: #{tpu_custom_call.1} parent=5 // pred_region
        // Predicated region
        $region33: #{tpu_custom_call.1} parent=31 // pred_check
          %p184 = pneg %p37
        $region34: #{tpu_custom_call.1} parent=31 // pred_check_branch
          %186 = sbr.rel (%p184) target = $region36
        $region35: #{tpu_custom_call.1} parent=31 // pred_region
          %s187 = sand.u32 %s27, 1
          %s188 = scalar_lea.sflag [#allocation3], %s187
          %s189 = sand.u32 %s27, 1
          %s190 = smul.addr %s189, 32
          %s191 = scalar_lea.vmem [#allocation2], %s190
          %193 = vsyncadd %s188, 0
          %s194 = smul.addr %s17, 4
          %s195 = smul.addr %s194, 8
          %s196 = scalar_lea.hbm %s0, %s195
          %s197 = sshll.u32 %s196, 4
          %s198 = int_to_ptr.hbm [resolvable:$true] %s197
          %s199 = sshll.u32 %s191, 4
          %s200 = int_to_ptr.vmem [resolvable:$true] %s199
          %205 = dma.hbm_to_vmem [thread:$0]  %s198, 512, %s200, %s188, 256, 256, 16
        $region36: #{tpu_custom_call.1} parent=31 // pred_fallthru
          _
      $region32: #{tpu_custom_call.1} parent=5 // pred_fallthru
        _
      %p206 = scmp.le.s32.totalorder 1, %s17
      %p207 = scmp.lt.s32.totalorder %s17, 3
      %p208 = pnand %p206, %p207
      %p209 = pneg %p208
      // Predicated region
      $region37: #{tpu_custom_call.1} parent=5 // pred_check
        _
      $region38: #{tpu_custom_call.1} parent=5 // pred_check_branch
        %211 = sbr.rel (%p208) target = $region40
      $region39: #{tpu_custom_call.1} parent=5 // pred_region
        %s212 = ssub.s32 %s17, 1
        %s213 = sand.u32 %s30, 1
        %s214 = scalar_lea.sflag [#allocation3], %s213
        %s215 = sand.u32 %s30, 1
        %s216 = smul.addr %s215, 32
        %s217 = scalar_lea.vmem [#allocation2], %s216
        // Predicated region
        $region41: #{tpu_custom_call.1} parent=39 // pred_check
          %p218 = pneg %p43
        $region42: #{tpu_custom_call.1} parent=39 // pred_check_branch
          %220 = sbr.rel (%p218) target = $region44
        $region43: #{tpu_custom_call.1} parent=39 // pred_region
          %222 = dma.done %s214, 512
        $region44: #{tpu_custom_call.1} parent=39 // pred_fallthru
          _
        %s223 = sand.u32 %s30, 1
        %s224 = scalar_lea.sflag [#allocation3], %s223
        %s225 = sand.u32 %s30, 1
        %s226 = smul.addr %s225, 32
        %s227 = scalar_lea.vmem [#allocation2], %s226
        %p228 = pneg %p43
        %p229 = pneg %p40
        %p230 = pneg %p64
        %p231 = pneg %p61
        %p232 = pneg %p85
        %p233 = pneg %p82
        %p234 = pneg %p106
        %p235 = pneg %p103
        %p236 = pneg %p127
        %p237 = pneg %p124
        %p238 = pneg %p153
        %p239 = pneg %p150
        %s240 = sand.u32 %s140, 1
        %s241 = scalar_lea.sflag [#allocation4], %s240
        %s242 = sand.u32 %s140, 1
        %s243 = smul.addr %s242, 32
        %s244 = scalar_lea.vmem [#allocation5], %s243
        %v245 = vld [vmem:[%s217] sm:$0xff]
        %v246 = vld [vmem:[%s217 + $0x8] sm:$0xff]
        %v247 = vld [vmem:[%s217 + $0x10] sm:$0xff]
        %v248 = vld [vmem:[%s217 + $0x18] sm:$0xff]
        %v249 = vadd.f32 %v245, %v246
        %250 = vadd.xlane.f32.xlu0 %v249
        %v251 = vpop.xlane.xlu0 %250
        %v252 = vadd.f32 %v247, %v248
        %253 = vadd.xlane.f32.xlu0 %v252
        %v254 = vpop.xlane.xlu0 %253
        %v255 = vmul.f32 %v251, 0.00390625
        %v256 = vmul.f32 %v254, 0.00390625
        %v257 = vld [vmem:[%s1] sm:$0xf]
        %v260 = vlaneseq
        %v261 = vand.u32 %v260, 127
        %v262 = vperm.slane %v255, %v261
        %v263 = vadd.s32 %v261, 4294967288
        %v264 = vperm.slane %v256, %v263
        %vm265 = vcmask 130112
        %v266 = vsel %vm265, %v264, %v262
        %vm267 = vcmask 1042434
        %v268 = vsel %vm267, %v266, %v266
        %vm269 = vcmask 1043459
        %v270 = vsel %vm269, %v266, %v268
        %v272 = vmul.f32 %v257, %v270
        %vm273 = vcmask 125952
        %v274 = vsel %vm273, %v272, 0.0
        %275 = vadd.xlane.f32.xlu0 %v274
        %v276 = vpop.xlane.xlu0 %275
        %v277 = vld [vmem:[%s2] sm:$0x1]
        %v279 = vperm.slane %v277, 0
        %v280 = vlaneseq
        %v281 = vshrl.u32 %v280, 7
        %283 = vset.pattern.permute.xlu0 %v281
        %284 = vperm.xlu0 %283, %v279
        %v285 = vpop.permute.xlu0 %284
        %v287 = vadd.f32 %v276, %v285
        %v288 = vmax.f32 %v287, 0.0
        %v289 = vld [vmem:[%s3] sm:$0xff]
        %v290 = vld [vmem:[%s3 + $0x8] sm:$0xff]
        %292 = vset.pattern.permute.xlu0 0
        %293 = vperm.xlu0 %292, %v288
        %v294 = vpop.permute.xlu0 %293
        %v295 = vperm.slane %v294, %v261
        %v296 = vsel %vm267, %v295, %v295
        %v297 = vsel %vm269, %v295, %v296
        %vm298 = vcmask 1044484
        %v299 = vsel %vm298, %v295, %v297
        %vm300 = vcmask 1045509
        %v301 = vsel %vm300, %v295, %v299
        %vm302 = vcmask 1046534
        %v303 = vsel %vm302, %v295, %v301
        %vm304 = vcmask 1047559
        %v305 = vsel %vm304, %v295, %v303
        %v307 = vmul.f32 %v289, %v305
        %v308 = vmul.f32 %v290, %v305
        %vm309 = vcmask 31744
        %v310 = vsel %vm309, %v307, 0.0
        %311 = vadd.xlane.f32.xlu0 %v310
        %v312 = vpop.xlane.xlu0 %311
        %v313 = vsel %vm309, %v308, 0.0
        %314 = vadd.xlane.f32.xlu0 %v313
        %v315 = vpop.xlane.xlu0 %314
        %v316 = vld [vmem:[%s4] sm:$0xff]
        %v317 = vld [vmem:[%s4 + $0x8] sm:$0xff]
        %v318 = vadd.f32 %v312, %v316
        %v319 = vadd.f32 %v315, %v317
        %v320 = vxor.u32 %v318, 2147483648
        %v321 = vxor.u32 %v319, 2147483648
        %v322 = vmul.f32 %v320, 1.442695
        %v323 = vpow.pop %v322
        %v324 = vmul.f32 %v321, 1.442695
        %v325 = vpow.pop %v324
        %v326 = vadd.f32 %v323, 1.0
        %v327 = vadd.f32 %v325, 1.0
        %v328 = vrcp.pop %v326
        %v329 = vmul.f32 %v326, %v328
        %v330 = vsub.f32 1.0, %v329
        %v331 = vmul.f32 %v328, %v330
        %v332 = vadd.f32 %v328, %v331
        %vm333 = vweird.f32 %v326
        %vm334 = vweird.f32 %v328
        %vm335 = vmor %vm333, %vm334
        %v336 = vsel %vm335, %v328, %v332
        %v337 = vand.u32 2147483647, %v326
        %vm338 = vcmp.eq.f32.partialorder %v337, 8.507059e+37
        %v339 = vand.u32 %v326, 2147483648
        %v340 = vor.u32 1.1754944e-38, %v339
        %v341 = vsel %vm338, %v340, %v336
        %v342 = vmul.f32 1.0, %v341
        %v343 = vrcp.pop %v327
        %v344 = vmul.f32 %v327, %v343
        %v345 = vsub.f32 1.0, %v344
        %v346 = vmul.f32 %v343, %v345
        %v347 = vadd.f32 %v343, %v346
        %vm348 = vweird.f32 %v327
        %vm349 = vweird.f32 %v343
        %vm350 = vmor %vm348, %vm349
        %v351 = vsel %vm350, %v343, %v347
        %v352 = vand.u32 2147483647, %v327
        %vm353 = vcmp.eq.f32.partialorder %v352, 8.507059e+37
        %v354 = vand.u32 %v327, 2147483648
        %v355 = vor.u32 1.1754944e-38, %v354
        %v356 = vsel %vm353, %v355, %v351
        %v357 = vmul.f32 1.0, %v356
        %359 = vset.pattern.permute.xlu0 0
        %360 = vperm.xlu0 %359, %v342
        %v361 = vpop.permute.xlu0 %360
        %364 = vset.pattern.permute.xlu0 0
        %365 = vperm.xlu0 %364, %v357
        %v366 = vpop.permute.xlu0 %365
        %v368 = vmul.f32 %v245, %v361
        %v369 = vmul.f32 %v246, %v361
        %v370 = vmul.f32 %v247, %v366
        %v371 = vmul.f32 %v248, %v366
        %372 = vst [vmem:[%s244] sm:$0xff] %v368
        %373 = vst [vmem:[%s244 + $0x8] sm:$0xff] %v369
        %374 = vst [vmem:[%s244 + $0x10] sm:$0xff] %v370
        %375 = vst [vmem:[%s244 + $0x18] sm:$0xff] %v371
        %s376 = sand.u32 %s140, 1
        %s377 = scalar_lea.sflag [#allocation4], %s376
        %s378 = sand.u32 %s140, 1
        %s379 = smul.addr %s378, 32
        %s380 = scalar_lea.vmem [#allocation5], %s379
        // Predicated region
        $region45: #{tpu_custom_call.1} parent=39 // pred_check
          %p381 = pneg %p150
        $region46: #{tpu_custom_call.1} parent=39 // pred_check_branch
          %383 = sbr.rel (%p381) target = $region48
        $region47: #{tpu_custom_call.1} parent=39 // pred_region
          %385 = vsyncadd %s377, 0
          %s386 = smul.addr %s22, 4
          %s387 = smul.addr %s386, 8
          %s388 = scalar_lea.hbm %s5, %s387
          %s389 = sshll.u32 %s380, 4
          %s390 = int_to_ptr.vmem [resolvable:$true] %s389
          %s391 = sshll.u32 %s388, 4
          %s392 = int_to_ptr.hbm [resolvable:$true] %s391
          %397 = dma.vmem_to_hbm [thread:$0]  %s390, 512, %s392, %s377, 256, 256, 16
        $region48: #{tpu_custom_call.1} parent=39 // pred_fallthru
          _
      $region40: #{tpu_custom_call.1} parent=5 // pred_fallthru
        _
      %p398 = scmp.le.s32.totalorder 2, %s17
      // Predicated region
      $region49: #{tpu_custom_call.1} parent=5 // pred_check
        %p399 = pneg %p398
      $region50: #{tpu_custom_call.1} parent=5 // pred_check_branch
        %401 = sbr.rel (%p399) target = $region52
      $region51: #{tpu_custom_call.1} parent=5 // pred_region
        %s402 = ssub.s32 %s17, 2
        // Predicated region
        $region53: #{tpu_custom_call.1} parent=51 // pred_check
          %p403 = pneg %p156
        $region54: #{tpu_custom_call.1} parent=51 // pred_check_branch
          %405 = sbr.rel (%p403) target = $region56
        $region55: #{tpu_custom_call.1} parent=51 // pred_region
          %s406 = sand.u32 %s141, 1
          %s407 = scalar_lea.sflag [#allocation4], %s406
          %s408 = sand.u32 %s141, 1
          %s409 = smul.addr %s408, 32
          %s410 = scalar_lea.vmem [#allocation5], %s409
          %412 = dma.done %s407, 512
        $region56: #{tpu_custom_call.1} parent=51 // pred_fallthru
          _
      $region52: #{tpu_custom_call.1} parent=5 // pred_fallthru
        _
    $region6: #{tpu_custom_call.1} parent=1 // loop_footer
      %s21 = sadd.s32 1, %s17
    $region7: #{tpu_custom_call.1} parent=1 // loop_footer_branch
      %16 = sbr.rel target = $region3
    $region8: #{tpu_custom_call.1} parent=1 // loop_exit
      _
    %413 = vsyncpa [#allocation3], 1
    %s414 = scalar_lea.sflag [#allocation3], 1
    %415 = vsyncpa %s414, 1
    %416 = vsyncpa [#allocation4], 1
    %s417 = scalar_lea.sflag [#allocation4], 1
    %418 = vsyncpa %s417, 1

</llo_original>
